<compile_context>
chip_gen: v5e
topology: v5e:2x2
jax: 0.10.0
libtpu: 0.0.40
codegen_flags: <defaults>
</compile_context>

<pallas_src>
import math

import jax
import jax.numpy as jnp
from jax import lax
from jax.experimental import pallas as pl
from jax.experimental.pallas import tpu as pltpu

_INV_SQRT2 = 1.0 / math.sqrt(2.0)


def _cdiv(a, b):
    return (a + b - 1) // b


def _round_up(a, b):
    return _cdiv(a, b) * b


def _vmem_capacity_bytes():
    """One-time hardware query; falls back to the smallest (v7x) per-core VMEM."""
    try:
        return int(pltpu.get_tpu_info().vmem_capacity_bytes)
    except Exception:
        return 64 << 20


_VMEM_CAP = _vmem_capacity_bytes()
_VMEM_BUDGET = max(32 << 20, _VMEM_CAP - (16 << 20))  # leave compiler headroom


# --------------------------------------------------------------------------------------
# Kernel
# --------------------------------------------------------------------------------------
def _adapter_kernel(x_ref, wd_ref, bd_ref, wu_ref, bu_ref, o_ref):
    """One row tile: out = x + up_proj(gelu(down_proj(x)))."""
    x = x_ref[...]                                                    # (tm, D), I/O dtype

    # Down projection on the MXU, f32 accumulation: (tm, D) @ (D, Rp) + (1, Rp).
    z = jnp.dot(x, wd_ref[...], preferred_element_type=jnp.float32) + bd_ref[...]

    # Exact GELU (PyTorch nn.GELU default, approximate='none'), kept in f32
    # (EUP erf; v5e has no bf16 VPU/EUP path).
    z = 0.5 * z * (1.0 + lax.erf(z * _INV_SQRT2))

    # Up projection: (tm, Rp) @ (Rp, D) + (1, D), f32 accumulation.
    y = jnp.dot(z.astype(wu_ref.dtype), wu_ref[...],
                preferred_element_type=jnp.float32) + bu_ref[...]

    # Residual add in f32, single downcast to the I/O dtype.
    o_ref[...] = (x.astype(jnp.float32) + y).astype(o_ref.dtype)


# --------------------------------------------------------------------------------------
# One-time parameter prep (do NOT call per forward pass)
# --------------------------------------------------------------------------------------
def prepare_adapter_params(w_down, b_down, w_up, b_up, *, compute_dtype):
    """Pad adapter rank to a 128-lane multiple and cast weights once.

    w_down : (D, R)   (transposed from PyTorch's (R, D) storage)
    b_down : (R,)
    w_up   : (R, D)   (transposed from PyTorch's (D, R) storage)
    b_up   : (D,)
    """
    D, R = w_down.shape
    R_pad = _round_up(R, 128)
    if R_pad != R:
        pad = R_pad - R
        # Exact: padded lanes are zero, gelu(0) = 0, and they hit zero rows of W_up.
        w_down = jnp.pad(w_down, ((0, 0), (0, pad)))
        b_down = jnp.pad(b_down, ((0, pad),))
        w_up = jnp.pad(w_up, ((0, pad), (0, 0)))
    return (
        w_down.astype(compute_dtype),                    # (D, R_pad) matmul dtype
        b_down.astype(jnp.float32).reshape(1, R_pad),    # adds onto the f32 accumulator
        w_up.astype(compute_dtype),                      # (R_pad, D)
        b_up.astype(jnp.float32).reshape(1, D),
    )


# --------------------------------------------------------------------------------------
# Tiling policy
# --------------------------------------------------------------------------------------
def _pick_tm(N, D, R_pad, dtype):
    """Largest sublane-aligned row tile that fits the VMEM budget.

    Ensures >= 2 grid steps when the token count allows (v7x megacore), and prefers
    a tile that divides N exactly so x never needs an HBM padding pass.
    """
    itemsize = jnp.dtype(dtype).itemsize
    sub = max(8, 32 // itemsize)              # sublane packing: 8 f32 / 16 bf16 / 32 int8
    # Weights + biases (grid-invariant, default double-buffered BlockSpec).
    weight_bytes = 2 * (2 * D * R_pad * itemsize + (R_pad + D) * 4)

    def footprint(tm):
        io = 2 * 2 * tm * D * itemsize        # x + out tiles, double-buffered
        interm = tm * (R_pad + 2 * D) * 4     # f32 z, y and the f32 x upcast
        return io + interm + weight_bytes + (4 << 20)

    n_round = _round_up(N, sub)

    tm = max(sub, (min(1024, n_round) // sub) * sub)
    while tm > sub and footprint(tm) > _VMEM_BUDGET:
        tm = max(sub, _round_up(tm // 2, sub))

    # v7x has 2 TensorCores: "parallel" on the token axis only helps with >= 2 steps.
    if _cdiv(N, tm) < 2 and n_round >= 2 * sub:
        tm = max(sub, _round_up(_cdiv(n_round, 2), sub))

    # Prefer a tile that divides N exactly (avoids padding x in HBM), as long as it
    # doesn't shrink the tile by more than 4x.
    if N % tm != 0:
        d = (tm // sub) * sub
        while d >= sub and N % d != 0:
            d -= sub
        if d >= sub and N % d == 0 and d * 4 >= tm:
            tm = d
    return tm


# --------------------------------------------------------------------------------------
# Public wrapper (pure; safe to wrap in jax.jit)
# --------------------------------------------------------------------------------------
def parallel_adapter(x, w_down, b_down, w_up, b_up):
    """out = x + gelu(x @ w_down + b_down) @ w_up + b_up, fused in one Pallas kernel.

    Expects parameters from `prepare_adapter_params` (rank padded to a 128-lane
    multiple, weights in the matmul dtype, biases as (1, R_pad) / (1, D) f32 rows).
    """
    *lead, D = x.shape
    N = int(math.prod(lead)) if lead else 1
    R_pad = w_down.shape[1]
    assert w_down.shape[0] == D and w_up.shape == (R_pad, D)
    dtype = x.dtype

    tm = _pick_tm(N, D, R_pad, dtype)
    N_pad = _round_up(N, tm)

    x2 = x.reshape(N, D)
    if N_pad != N:
        # Rare: only when no sublane-aligned divisor of N exists near the tile size.
        x2 = jnp.pad(x2, ((0, N_pad - N), (0, 0)))

    out = pl.pallas_call(
        _adapter_kernel,
        out_shape=jax.ShapeDtypeStruct((N_pad, D), dtype),
        grid_spec=pltpu.PrefetchScalarGridSpec(
            num_scalar_prefetch=0,
            grid=(N_pad // tm,),
            in_specs=[
                pl.BlockSpec((tm, D), lambda i: (i, 0)),      # x row tile (streamed)
                pl.BlockSpec((D, R_pad), lambda i: (0, 0)),   # W_down (resident)
                pl.BlockSpec((1, R_pad), lambda i: (0, 0)),   # b_down
                pl.BlockSpec((R_pad, D), lambda i: (0, 0)),   # W_up (resident)
                pl.BlockSpec((1, D), lambda i: (0, 0)),       # b_up
            ],
            out_specs=pl.BlockSpec((tm, D), lambda i: (i, 0)),
        ),
        compiler_params=pltpu.CompilerParams(
            # Token axis is fully parallel -> shards across TensorCores on v7x.
            dimension_semantics=("parallel",),
            vmem_limit_bytes=int(_VMEM_BUDGET),
        ),
    )(x2, w_down, b_down, w_up, b_up)

    if N_pad != N:
        out = out[:N]
    return out.reshape(x.shape)


# --------------------------------------------------------------------------------------
# Reference + demo
# --------------------------------------------------------------------------------------
def _reference(x, w_down, b_down, w_up, b_up):
    """Pure-JAX f32 reference of the PyTorch module (highest-precision matmuls)."""
    hp = jax.lax.Precision.HIGHEST
    xf = x.astype(jnp.float32)
    z = jnp.dot(xf, w_down.astype(jnp.float32), precision=hp) + b_down.astype(jnp.float32)
    z = 0.5 * z * (1.0 + lax.erf(z * _INV_SQRT2))
    y = jnp.dot(z, w_up.astype(jnp.float32), precision=hp) + b_up.astype(jnp.float32)
    return (xf + y).astype(x.dtype)


if __name__ == "__main__":
    # Shapes implied by the module: (batch, seq, embed_dim), adapter_rank=32.
    B, S, D, R = 2, 8, 32, 32

    key = jax.random.PRNGKey(0)
    kx, kwd, kbd, kwu, kbu = jax.random.split(key, 5)

    x = jax.random.normal(kx, (B, S, D), dtype=jnp.float32)

    # Deterministic init mimicking nn.Linear's uniform(-1/sqrt(fan_in), +1/sqrt(fan_in)),
    # stored pre-transposed as (in, out) for the kernel.
    bound_d = 1.0 / math.sqrt(D)   # down_proj fan_in = embed_dim
    bound_r = 1.0 / math.sqrt(R)   # up_proj fan_in = adapter_rank
    w_down = jax.random.uniform(kwd, (D, R), jnp.float32, -bound_d, bound_d)
    b_down = jax.random.uniform(kbd, (R,), jnp.float32, -bound_d, bound_d)
    w_up = jax.random.uniform(kwu, (R, D), jnp.float32, -bound_r, bound_r)
    b_up = jax.random.uniform(kbu, (D,), jnp.float32, -bound_r, bound_r)

    # One-time parameter prep (rank padded to 128 lanes, cast to the matmul dtype).
    params = prepare_adapter_params(w_down, b_down, w_up, b_up, compute_dtype=x.dtype)

    adapter = jax.jit(parallel_adapter)
    out = jax.block_until_ready(adapter(x, *params))

    ref = _reference(x, w_down, b_down, w_up, b_up)
    assert out.shape == (B, S, D)
    # Tolerance covers MXU f32 matmul pass differences vs the HIGHEST-precision reference.
    assert jnp.allclose(out, ref, atol=2e-3, rtol=2e-3), "mismatch vs reference"

    print("KERNEL_OK")
</pallas_src>

<mosaic_0001>
module attributes {stable_mosaic.version = 11 : i64} {
  func.func @_adapter_kernel(%arg0: i32, %arg1: memref<8x32xf32, #tpu.memory_space<vmem>>, %arg2: memref<32x128xf32, #tpu.memory_space<vmem>>, %arg3: memref<1x128xf32, #tpu.memory_space<vmem>>, %arg4: memref<128x32xf32, #tpu.memory_space<vmem>>, %arg5: memref<1x32xf32, #tpu.memory_space<vmem>>, %arg6: memref<8x32xf32, #tpu.memory_space<vmem>>) attributes {dimension_semantics = [#tpu.dimension_semantics<parallel>], iteration_bounds = array<i64: 2>, scalar_prefetch = 0 : i64, scratch_operands = 0 : i64, tpu.core_type = #tpu.core_type<tc>, window_params = [{transform_indices = @transform_0, window_bounds = array<i64: 8, 32>}, {pipeline_mode = #tpu.pipeline_mode<synchronous>, transform_indices = @transform_1, window_bounds = array<i64: 32, 128>}, {pipeline_mode = #tpu.pipeline_mode<synchronous>, transform_indices = @transform_2, window_bounds = array<i64: 1, 128>}, {pipeline_mode = #tpu.pipeline_mode<synchronous>, transform_indices = @transform_3, window_bounds = array<i64: 128, 32>}, {pipeline_mode = #tpu.pipeline_mode<synchronous>, transform_indices = @transform_4, window_bounds = array<i64: 1, 32>}, {transform_indices = @transform_5, window_bounds = array<i64: 8, 32>}]} {
    %c0 = arith.constant 0 : index
    %c0_0 = arith.constant 0 : index
    %0 = vector.load %arg1[%c0, %c0_0] : memref<8x32xf32, #tpu.memory_space<vmem>>, vector<8x32xf32>
    %c0_1 = arith.constant 0 : index
    %c0_2 = arith.constant 0 : index
    %1 = vector.load %arg2[%c0_1, %c0_2] : memref<32x128xf32, #tpu.memory_space<vmem>>, vector<32x128xf32>
    %cst = arith.constant dense<0.000000e+00> : vector<8x128xf32>
    %2 = tpu.matmul %0, %1, %cst {dimension_numbers = #tpu.dot_dimension_numbers<[1], [0], [0], [1], [0, 0, 1, 1], [], []>} : vector<8x32xf32>, vector<32x128xf32>, vector<8x128xf32> -> vector<8x128xf32>
    %c0_3 = arith.constant 0 : index
    %c0_4 = arith.constant 0 : index
    %3 = vector.load %arg3[%c0_3, %c0_4] : memref<1x128xf32, #tpu.memory_space<vmem>>, vector<1x128xf32>
    %4 = vector.broadcast %3 : vector<1x128xf32> to vector<8x128xf32>
    %5 = arith.addf %2, %4 : vector<8x128xf32>
    %cst_5 = arith.constant 5.000000e-01 : f32
    %6 = vector.broadcast %cst_5 : f32 to vector<8x128xf32>
    %7 = arith.mulf %6, %5 : vector<8x128xf32>
    %cst_6 = arith.constant 0.707106769 : f32
    %8 = vector.broadcast %cst_6 : f32 to vector<8x128xf32>
    %9 = arith.mulf %5, %8 : vector<8x128xf32>
    %10 = math.erf %9 : vector<8x128xf32>
    %cst_7 = arith.constant 1.000000e+00 : f32
    %11 = vector.broadcast %cst_7 : f32 to vector<8x128xf32>
    %12 = arith.addf %11, %10 : vector<8x128xf32>
    %13 = arith.mulf %7, %12 : vector<8x128xf32>
    %c0_8 = arith.constant 0 : index
    %c0_9 = arith.constant 0 : index
    %14 = vector.load %arg4[%c0_8, %c0_9] : memref<128x32xf32, #tpu.memory_space<vmem>>, vector<128x32xf32>
    %cst_10 = arith.constant dense<0.000000e+00> : vector<8x32xf32>
    %15 = tpu.matmul %13, %14, %cst_10 {dimension_numbers = #tpu.dot_dimension_numbers<[1], [0], [0], [1], [0, 0, 1, 1], [], []>} : vector<8x128xf32>, vector<128x32xf32>, vector<8x32xf32> -> vector<8x32xf32>
    %c0_11 = arith.constant 0 : index
    %c0_12 = arith.constant 0 : index
    %16 = vector.load %arg5[%c0_11, %c0_12] : memref<1x32xf32, #tpu.memory_space<vmem>>, vector<1x32xf32>
    %17 = vector.broadcast %16 : vector<1x32xf32> to vector<8x32xf32>
    %18 = arith.addf %15, %17 : vector<8x32xf32>
    %19 = arith.addf %0, %18 : vector<8x32xf32>
    %c0_13 = arith.constant 0 : index
    %c0_14 = arith.constant 0 : index
    %20 = vector.load %arg6[%c0_13, %c0_14] : memref<8x32xf32, #tpu.memory_space<vmem>>, vector<8x32xf32>
    tpu.vector_store %arg6[%c0_13, %c0_14], %19 {strides = array<i32>} : memref<8x32xf32, #tpu.memory_space<vmem>>, vector<8x32xf32>,
    return
  }
  func.func @transform_0(%arg0: i32) -> (i32, i32) {
    %c0_i32 = arith.constant 0 : i32
    %c0_i32_0 = arith.constant 0 : i32
    return %arg0, %c0_i32 : i32, i32
  }
  func.func @transform_1(%arg0: i32) -> (i32, i32) {
    %c0_i32 = arith.constant 0 : i32
    %c0_i32_0 = arith.constant 0 : i32
    %c0_i32_1 = arith.constant 0 : i32
    return %c0_i32, %c0_i32_0 : i32, i32
  }
  func.func @transform_2(%arg0: i32) -> (i32, i32) {
    %c0_i32 = arith.constant 0 : i32
    %c0_i32_0 = arith.constant 0 : i32
    %c0_i32_1 = arith.constant 0 : i32
    return %c0_i32, %c0_i32_0 : i32, i32
  }
  func.func @transform_3(%arg0: i32) -> (i32, i32) {
    %c0_i32 = arith.constant 0 : i32
    %c0_i32_0 = arith.constant 0 : i32
    %c0_i32_1 = arith.constant 0 : i32
    return %c0_i32, %c0_i32_0 : i32, i32
  }
  func.func @transform_4(%arg0: i32) -> (i32, i32) {
    %c0_i32 = arith.constant 0 : i32
    %c0_i32_0 = arith.constant 0 : i32
    %c0_i32_1 = arith.constant 0 : i32
    return %c0_i32, %c0_i32_0 : i32, i32
  }
  func.func @transform_5(%arg0: i32) -> (i32, i32) {
    %c0_i32 = arith.constant 0 : i32
    %c0_i32_0 = arith.constant 0 : i32
    return %arg0, %c0_i32 : i32, i32
  }
}

</mosaic_0001>

<llo_original>
// kernel: parallel_adapter.1
$region0: #{parallel_adapter.1}
  #allocation0 [shape = 'u32[]', space=smem, size = 0x4, offset = 0x4, fixed_abs, tag = 'smem constant byte address 0x4 - core index']
  #allocation1 [shape = 'u32[72,128]{1,0:T(1,128)}', space=vmem, size = 0x9000, scoped, tag = 'internal scratch']
  %s0 = inlined_call_operand.vmem [shape: f32[16,32], index: 0, kind: input, shape index: {}]
  %s1 = inlined_call_operand.vmem [shape: f32[32,128], index: 1, kind: input, shape index: {}]
  %s2 = inlined_call_operand.vmem [shape: f32[1,128], index: 2, kind: input, shape index: {}]
  %s3 = inlined_call_operand.vmem [shape: f32[128,32], index: 3, kind: input, shape index: {}]
  %s4 = inlined_call_operand.vmem [shape: f32[1,32], index: 4, kind: input, shape index: {}]
  %s5 = inlined_call_operand.hbm [shape: f32[16,32], index: 5, kind: output, shape index: {}]
  %s6 = sld [smem:[#allocation0]]
  $region53: #{parallel_adapter.1} parent=0
    _
  %s8 = ssub.s32 1, %s6
  %s9 = scalar_select 0, %s8, %s6
  $region1: #{parallel_adapter.1} parent=0
    #allocation2 [shape = 'u8[8192]{0}', space=vmem, size = 0x2000, scoped, tag = 'output window, operand 0']
    #allocation3 [shape = 's32[2]{0}', space=sflag, size = 0x8, scoped, tag = 'scoped memory for parallel_adapter.1']
    %10 = vsyncpa [#allocation3], 0
    %s11 = scalar_lea.sflag [#allocation3], 1
    %12 = vsyncpa %s11, 0
    loop: start=0, step=1, limit=4
    $region2: #{parallel_adapter.1} parent=1 // loop_pre_header
      _
    $region3: #{parallel_adapter.1} parent=1 // loop_header
      %s14 = sphi 0, %s18
      %p15 = scmp.ge.s32.totalorder %s14, 4
      %s24 = sphi 0, %s26
      %s27 = sphi 0, %s24
      %s28 = sphi 0, %s27
      %s44 = sphi 0, %s28
      %s48 = sphi 0, %s48
      %s50 = sphi 0, %s48
      %s51 = sphi 0, %s50
      %s65 = sphi 0, %s51
      %s69 = sphi 0, %s69
      %s71 = sphi 0, %s69
      %s72 = sphi 0, %s71
      %s86 = sphi 0, %s72
      %s90 = sphi 0, %s90
      %s92 = sphi 0, %s90
      %s93 = sphi 0, %s92
      %s107 = sphi 0, %s93
      %s111 = sphi 0, %s111
      %s113 = sphi 0, %s111
      %s114 = sphi 0, %s113
      %s128 = sphi 0, %s114
      %s134 = sphi 0, %s136
      %s137 = sphi 0, %s134
      %s138 = sphi 0, %s137
      %s154 = sphi 0, %s138
    $region4: #{parallel_adapter.1} parent=1 // loop_header_branch
      %17 = sbr.rel (%p15) target = $region8
    $region5: #{parallel_adapter.1} parent=1 // loop_body
      %s19 = ssub.s32 %s14, 1
      %s20 = ssub.s32 %s14, 2
      %s21 = sadd.s32 %s14, 1
      %s22 = ssub.s32 %s14, %s21
      %p23 = scmp.eq.s32.totalorder %s22, 0
      %s25 = sadd.s32 %s24, 1
      %s26 = scalar_select %p23, %s24, %s25
      %p29 = pneg %p23
      %p30 = scmp.eq.s32.totalorder %s14, 1
      %p31 = por %p29, %p30
      %p32 = scmp.ne.s32.totalorder %s24, %s27
      %p33 = scmp.eq.s32.totalorder %s14, 0
      %p34 = por %p32, %p33
      %p35 = scmp.ne.s32.totalorder %s24, %s27
      %p36 = scmp.eq.s32.totalorder %s19, 1
      %p37 = por %p35, %p36
      %p38 = scmp.ne.s32.totalorder %s27, %s28
      %p39 = scmp.eq.s32.totalorder %s19, 0
      %p40 = por %p38, %p39
      %p41 = scmp.ne.s32.totalorder %s27, %s28
      %p42 = scmp.eq.s32.totalorder %s20, 1
      %p43 = por %p41, %p42
      %p45 = scmp.ne.s32.totalorder %s28, %s44
      %p46 = scmp.eq.s32.totalorder %s20, 0
      %p47 = por %p45, %p46
      %s49 = sadd.s32 %s48, 1
      %p52 = scmp.eq.s32.totalorder %s14, 1
      %p53 = scmp.ne.s32.totalorder %s48, %s50
      %p54 = scmp.eq.s32.totalorder %s14, 0
      %p55 = por %p53, %p54
      %p56 = scmp.ne.s32.totalorder %s48, %s50
      %p57 = scmp.eq.s32.totalorder %s19, 1
      %p58 = por %p56, %p57
      %p59 = scmp.ne.s32.totalorder %s50, %s51
      %p60 = scmp.eq.s32.totalorder %s19, 0
      %p61 = por %p59, %p60
      %p62 = scmp.ne.s32.totalorder %s50, %s51
      %p63 = scmp.eq.s32.totalorder %s20, 1
      %p64 = por %p62, %p63
      %p66 = scmp.ne.s32.totalorder %s51, %s65
      %p67 = scmp.eq.s32.totalorder %s20, 0
      %p68 = por %p66, %p67
      %s70 = sadd.s32 %s69, 1
      %p73 = scmp.eq.s32.totalorder %s14, 1
      %p74 = scmp.ne.s32.totalorder %s69, %s71
      %p75 = scmp.eq.s32.totalorder %s14, 0
      %p76 = por %p74, %p75
      %p77 = scmp.ne.s32.totalorder %s69, %s71
      %p78 = scmp.eq.s32.totalorder %s19, 1
      %p79 = por %p77, %p78
      %p80 = scmp.ne.s32.totalorder %s71, %s72
      %p81 = scmp.eq.s32.totalorder %s19, 0
      %p82 = por %p80, %p81
      %p83 = scmp.ne.s32.totalorder %s71, %s72
      %p84 = scmp.eq.s32.totalorder %s20, 1
      %p85 = por %p83, %p84
      %p87 = scmp.ne.s32.totalorder %s72, %s86
      %p88 = scmp.eq.s32.totalorder %s20, 0
      %p89 = por %p87, %p88
      %s91 = sadd.s32 %s90, 1
      %p94 = scmp.eq.s32.totalorder %s14, 1
      %p95 = scmp.ne.s32.totalorder %s90, %s92
      %p96 = scmp.eq.s32.totalorder %s14, 0
      %p97 = por %p95, %p96
      %p98 = scmp.ne.s32.totalorder %s90, %s92
      %p99 = scmp.eq.s32.totalorder %s19, 1
      %p100 = por %p98, %p99
      %p101 = scmp.ne.s32.totalorder %s92, %s93
      %p102 = scmp.eq.s32.totalorder %s19, 0
      %p103 = por %p101, %p102
      %p104 = scmp.ne.s32.totalorder %s92, %s93
      %p105 = scmp.eq.s32.totalorder %s20, 1
      %p106 = por %p104, %p105
      %p108 = scmp.ne.s32.totalorder %s93, %s107
      %p109 = scmp.eq.s32.totalorder %s20, 0
      %p110 = por %p108, %p109
      %s112 = sadd.s32 %s111, 1
      %p115 = scmp.eq.s32.totalorder %s14, 1
      %p116 = scmp.ne.s32.totalorder %s111, %s113
      %p117 = scmp.eq.s32.totalorder %s14, 0
      %p118 = por %p116, %p117
      %p119 = scmp.ne.s32.totalorder %s111, %s113
      %p120 = scmp.eq.s32.totalorder %s19, 1
      %p121 = por %p119, %p120
      %p122 = scmp.ne.s32.totalorder %s113, %s114
      %p123 = scmp.eq.s32.totalorder %s19, 0
      %p124 = por %p122, %p123
      %p125 = scmp.ne.s32.totalorder %s113, %s114
      %p126 = scmp.eq.s32.totalorder %s20, 1
      %p127 = por %p125, %p126
      %p129 = scmp.ne.s32.totalorder %s114, %s128
      %p130 = scmp.eq.s32.totalorder %s20, 0
      %p131 = por %p129, %p130
      %s132 = ssub.s32 %s14, %s21
      %p133 = scmp.eq.s32.totalorder %s132, 0
      %s135 = sadd.s32 %s134, 1
      %s136 = scalar_select %p133, %s134, %s135
      %p139 = pneg %p133
      %p140 = scmp.eq.s32.totalorder %s14, 1
      %p141 = por %p139, %p140
      %p142 = scmp.ne.s32.totalorder %s134, %s137
      %p143 = scmp.eq.s32.totalorder %s14, 0
      %p144 = por %p142, %p143
      %p145 = scmp.ne.s32.totalorder %s134, %s137
      %p146 = scmp.eq.s32.totalorder %s19, 1
      %p147 = por %p145, %p146
      %p148 = scmp.ne.s32.totalorder %s137, %s138
      %p149 = scmp.eq.s32.totalorder %s19, 0
      %p150 = por %p148, %p149
      %p151 = scmp.ne.s32.totalorder %s137, %s138
      %p152 = scmp.eq.s32.totalorder %s20, 1
      %p153 = por %p151, %p152
      %p155 = scmp.ne.s32.totalorder %s138, %s154
      %p156 = scmp.eq.s32.totalorder %s20, 0
      %p157 = por %p155, %p156
      %p158 = scmp.le.s32.totalorder 1, %s14
      %p159 = scmp.lt.s32.totalorder %s14, 3
      %p160 = pnand %p158, %p159
      %p161 = pneg %p160
      // Predicated region
      $region9: #{parallel_adapter.1} parent=5 // pred_check
        _
      $region10: #{parallel_adapter.1} parent=5 // pred_check_branch
        %163 = sbr.rel (%p160) target = $region12
      $region11: #{parallel_adapter.1} parent=5 // pred_region
        %s164 = ssub.s32 %s14, 1
        // Predicated region
        $region13: #{parallel_adapter.1} parent=11 // pred_check
          %p165 = pneg %p61
        $region14: #{parallel_adapter.1} parent=11 // pred_check_branch
          %167 = sbr.rel (%p165) target = $region16
        $region15: #{parallel_adapter.1} parent=11 // pred_region
          _
        $region16: #{parallel_adapter.1} parent=11 // pred_fallthru
          _
        // Predicated region
        $region17: #{parallel_adapter.1} parent=11 // pred_check
          %p168 = pneg %p82
        $region18: #{parallel_adapter.1} parent=11 // pred_check_branch
          %170 = sbr.rel (%p168) target = $region20
        $region19: #{parallel_adapter.1} parent=11 // pred_region
          _
        $region20: #{parallel_adapter.1} parent=11 // pred_fallthru
          _
        // Predicated region
        $region21: #{parallel_adapter.1} parent=11 // pred_check
          %p171 = pneg %p103
        $region22: #{parallel_adapter.1} parent=11 // pred_check_branch
          %173 = sbr.rel (%p171) target = $region24
        $region23: #{parallel_adapter.1} parent=11 // pred_region
          _
        $region24: #{parallel_adapter.1} parent=11 // pred_fallthru
          _
        // Predicated region
        $region25: #{parallel_adapter.1} parent=11 // pred_check
          %p174 = pneg %p124
        $region26: #{parallel_adapter.1} parent=11 // pred_check_branch
          %176 = sbr.rel (%p174) target = $region28
        $region27: #{parallel_adapter.1} parent=11 // pred_region
          _
        $region28: #{parallel_adapter.1} parent=11 // pred_fallthru
          _
      $region12: #{parallel_adapter.1} parent=5 // pred_fallthru
        _
      %p177 = scmp.lt.s32.totalorder %s14, 2
      // Predicated region
      $region29: #{parallel_adapter.1} parent=5 // pred_check
        %p178 = pneg %p177
      $region30: #{parallel_adapter.1} parent=5 // pred_check_branch
        %180 = sbr.rel (%p178) target = $region32
      $region31: #{parallel_adapter.1} parent=5 // pred_region
        // Predicated region
        $region33: #{parallel_adapter.1} parent=31 // pred_check
          %p181 = pneg %p34
        $region34: #{parallel_adapter.1} parent=31 // pred_check_branch
          %183 = sbr.rel (%p181) target = $region36
        $region35: #{parallel_adapter.1} parent=31 // pred_region
          %p184 = scmp.lt.s32.totalorder %s14, 1
          %s185 = scalar_select %p184, %s14, 1
          %s186 = smul.addr %s185, 8
          %s187 = scalar_lea.vmem %s0, %s186
        $region36: #{parallel_adapter.1} parent=31 // pred_fallthru
          _
      $region32: #{parallel_adapter.1} parent=5 // pred_fallthru
        _
      %p188 = scmp.le.s32.totalorder 1, %s14
      %p189 = scmp.lt.s32.totalorder %s14, 3
      %p190 = pnand %p188, %p189
      %p191 = pneg %p190
      // Predicated region
      $region37: #{parallel_adapter.1} parent=5 // pred_check
        _
      $region38: #{parallel_adapter.1} parent=5 // pred_check_branch
        %193 = sbr.rel (%p190) target = $region40
      $region39: #{parallel_adapter.1} parent=5 // pred_region
        %s194 = ssub.s32 %s14, 1
        %p195 = scmp.lt.s32.totalorder %s19, 1
        %s196 = scalar_select %p195, %s19, 1
        %s197 = smul.addr %s196, 8
        %s198 = scalar_lea.vmem %s0, %s197
        %p199 = pneg %p40
        %p200 = pneg %p37
        %p201 = pneg %p61
        %p202 = pneg %p58
        %p203 = pneg %p82
        %p204 = pneg %p79
        %p205 = pneg %p103
        %p206 = pneg %p100
        %p207 = pneg %p124
        %p208 = pneg %p121
        %p209 = pneg %p150
        %p210 = pneg %p147
        %s211 = sand.u32 %s137, 1
        %s212 = scalar_lea.sflag [#allocation3], %s211
        %s213 = sand.u32 %s137, 1
        %s214 = smul.addr %s213, 8
        %s215 = scalar_lea.vmem [#allocation2], %s214
        %p216 = scmp.lt.s32.totalorder %s19, 1
        %s217 = scalar_select %p216, %s19, 1
        %s218 = smul.addr %s217, 8
        %s219 = scalar_lea.vmem %s0, %s218
        %v220 = vld [vmem:[%s219] sm:$0xff]
        %v221 = vld [vmem:[%s1] sm:$0xff]
        %v222 = vld [vmem:[%s1 + $0x8] sm:$0xff]
        %v223 = vld [vmem:[%s1 + $0x10] sm:$0xff]
        %v224 = vld [vmem:[%s1 + $0x18] sm:$0xff]
        %v225 = vld [vmem:[%s2] sm:$0x1]
        %v227 = vperm.slane %v225, 0
        %vm229 = vcmask 261120
        %v231 = vsel %vm229, %v220, 0
        %233 = vmatpush.msra.mxu0 0.0
        %234 = vmatpush.msra.mxu0 0.0
        %235 = vmatpush.msra.mxu0 0.0
        %236 = vmatpush.msra.mxu0 0.0
        %237 = vmatpush.msra.mxu0 0.0
        %238 = vmatpush.msra.mxu0 0.0
        %239 = vmatpush.msra.mxu0 0.0
        %240 = vmatpush.msra.mxu0 0.0
        %241 = vmatpush.msra.mxu0 0.0
        %242 = vmatpush.msra.mxu0 0.0
        %243 = vmatpush.msra.mxu0 0.0
        %244 = vmatpush.msra.mxu0 0.0
        %245 = vmatpush.msra.mxu0 %v224
        %246 = vmatpush.msra.mxu0 %v223
        %247 = vmatpush.msra.mxu0 %v222
        %248 = vmatpush.msra.mxu0 %v221
        %249 = vmatmul.f32.gmra.mxu0 %v231
        %v250 = vpop.f32.mrf.mxu0
        %v251 = vadd.f32 %v227, %v250
        %252 = vdwg.mxu0
        %v253 = vmul.f32 %v251, 0.5
        %v254 = vmul.f32 %v251, 0.70710677
        %v255 = vmul.f32 %v254, %v254
        %v256 = vmin.f32 16.0, %v255
        %v257 = vmul.f32 %v256, 2.1237322e-06
        %v258 = vadd.f32 %v257, 0.00028619796
        %v259 = vmul.f32 %v256, %v258
        %v260 = vadd.f32 %v259, 0.0036580483
        %v261 = vmul.f32 %v256, %v260
        %v262 = vadd.f32 %v261, 0.05243302
        %v263 = vmul.f32 %v256, %v262
        %v264 = vadd.f32 %v263, 0.18741608
        %v265 = vmul.f32 %v256, %v264
        %v266 = vadd.f32 %v265, 1.1283791
        %v267 = vmul.f32 %v254, %v266
        %v268 = vmul.f32 %v256, 3.8918573e-05
        %v269 = vadd.f32 %v268, 0.001143296
        %v270 = vmul.f32 %v256, %v269
        %v271 = vadd.f32 %v270, 0.014752088
        %v272 = vmul.f32 %v256, %v271
        %v273 = vadd.f32 %v272, 0.112945676
        %v274 = vmul.f32 %v256, %v273
        %v275 = vadd.f32 %v274, 0.4994258
        %v276 = vmul.f32 %v256, %v275
        %v277 = vadd.f32 %v276, 1.0
        %v278 = vrcp.pop %v277
        %v279 = vmul.f32 %v277, %v278
        %v280 = vsub.f32 1.0, %v279
        %v281 = vmul.f32 %v278, %v280
        %v282 = vadd.f32 %v278, %v281
        %vm283 = vweird.f32 %v277
        %vm284 = vweird.f32 %v278
        %vm285 = vmor %vm283, %vm284
        %v286 = vsel %vm285, %v278, %v282
        %v287 = vand.u32 2147483647, %v277
        %vm288 = vcmp.eq.f32.partialorder %v287, 8.507059e+37
        %v289 = vand.u32 %v277, 2147483648
        %v290 = vor.u32 1.1754944e-38, %v289
        %v291 = vsel %vm288, %v290, %v286
        %v292 = vmul.f32 %v267, %v291
        %v293 = vmin.f32 %v292, 1.0
        %v294 = vmax.f32 %v293, -1.0
        %v295 = vadd.f32 %v294, 1.0
        %v296 = vmul.f32 %v253, %v295
        %v297 = vld [vmem:[%s3] sm:$0xff]
        %v298 = vld [vmem:[%s3 + $0x8] sm:$0xff]
        %v299 = vld [vmem:[%s3 + $0x10] sm:$0xff]
        %v300 = vld [vmem:[%s3 + $0x18] sm:$0xff]
        %v301 = vld [vmem:[%s3 + $0x20] sm:$0xff]
        %v302 = vld [vmem:[%s3 + $0x28] sm:$0xff]
        %v303 = vld [vmem:[%s3 + $0x30] sm:$0xff]
        %v304 = vld [vmem:[%s3 + $0x38] sm:$0xff]
        %v305 = vld [vmem:[%s3 + $0x40] sm:$0xff]
        %v306 = vld [vmem:[%s3 + $0x48] sm:$0xff]
        %v307 = vld [vmem:[%s3 + $0x50] sm:$0xff]
        %v308 = vld [vmem:[%s3 + $0x58] sm:$0xff]
        %v309 = vld [vmem:[%s3 + $0x60] sm:$0xff]
        %v310 = vld [vmem:[%s3 + $0x68] sm:$0xff]
        %v311 = vld [vmem:[%s3 + $0x70] sm:$0xff]
        %v312 = vld [vmem:[%s3 + $0x78] sm:$0xff]
        %v313 = vld [vmem:[%s4] sm:$0x1]
        %v315 = vperm.slane %v313, 0
        %317 = vmatpush.msra.mxu0 %v312
        %318 = vmatpush.msra.mxu0 %v311
        %319 = vmatpush.msra.mxu0 %v310
        %320 = vmatpush.msra.mxu0 %v309
        %321 = vmatpush.msra.mxu0 %v308
        %322 = vmatpush.msra.mxu0 %v307
        %323 = vmatpush.msra.mxu0 %v306
        %324 = vmatpush.msra.mxu0 %v305
        %325 = vmatpush.msra.mxu0 %v304
        %326 = vmatpush.msra.mxu0 %v303
        %327 = vmatpush.msra.mxu0 %v302
        %328 = vmatpush.msra.mxu0 %v301
        %329 = vmatpush.msra.mxu0 %v300
        %330 = vmatpush.msra.mxu0 %v299
        %331 = vmatpush.msra.mxu0 %v298
        %332 = vmatpush.msra.mxu0 %v297
        %333 = vmatmul.f32.gmra.mxu0 %v296
        %v334 = vpop.f32.mrf.mxu0
        %v335 = vadd.f32 %v315, %v334
        %336 = vdwg.mxu0
        %v337 = vadd.f32 %v220, %v335
        %338 = vst.msk [vmem:[%s215] sm:$0xff] %vm229, %v337
        %s339 = sand.u32 %s137, 1
        %s340 = scalar_lea.sflag [#allocation3], %s339
        %s341 = sand.u32 %s137, 1
        %s342 = smul.addr %s341, 8
        %s343 = scalar_lea.vmem [#allocation2], %s342
        // Predicated region
        $region41: #{parallel_adapter.1} parent=39 // pred_check
          %p344 = pneg %p147
        $region42: #{parallel_adapter.1} parent=39 // pred_check_branch
          %346 = sbr.rel (%p344) target = $region44
        $region43: #{parallel_adapter.1} parent=39 // pred_region
          %348 = vsyncadd %s340, 0
          %s349 = smul.addr %s19, 8
          %s350 = scalar_lea.hbm %s5, %s349
          %s352 = sshll.u32 %s343, 4
          %s353 = int_to_ptr.vmem [resolvable:$true] %s352
          %s354 = sshll.u32 %s350, 4
          %s355 = int_to_ptr.hbm [resolvable:$true] %s354
          %357 = dma.vmem_to_hbm [thread:$0]  %s353, 128, %s355, %s340
        $region44: #{parallel_adapter.1} parent=39 // pred_fallthru
          _
      $region40: #{parallel_adapter.1} parent=5 // pred_fallthru
        _
      %p358 = scmp.le.s32.totalorder 2, %s14
      // Predicated region
      $region45: #{parallel_adapter.1} parent=5 // pred_check
        %p359 = pneg %p358
      $region46: #{parallel_adapter.1} parent=5 // pred_check_branch
        %361 = sbr.rel (%p359) target = $region48
      $region47: #{parallel_adapter.1} parent=5 // pred_region
        %s362 = ssub.s32 %s14, 2
        // Predicated region
        $region49: #{parallel_adapter.1} parent=47 // pred_check
          %p363 = pneg %p153
        $region50: #{parallel_adapter.1} parent=47 // pred_check_branch
          %365 = sbr.rel (%p363) target = $region52
        $region51: #{parallel_adapter.1} parent=47 // pred_region
          %s366 = sand.u32 %s138, 1
          %s367 = scalar_lea.sflag [#allocation3], %s366
          %s368 = sand.u32 %s138, 1
          %s369 = smul.addr %s368, 8
          %s370 = scalar_lea.vmem [#allocation2], %s369
          %372 = dma.done %s367, 128
        $region52: #{parallel_adapter.1} parent=47 // pred_fallthru
          _
      $region48: #{parallel_adapter.1} parent=5 // pred_fallthru
        _
    $region6: #{parallel_adapter.1} parent=1 // loop_footer
      %s18 = sadd.s32 1, %s14
    $region7: #{parallel_adapter.1} parent=1 // loop_footer_branch
      %13 = sbr.rel target = $region3
    $region8: #{parallel_adapter.1} parent=1 // loop_exit
      _
    %373 = vsyncpa [#allocation3], 1
    %s374 = scalar_lea.sflag [#allocation3], 1
    %375 = vsyncpa %s374, 1

</llo_original>
